<compile_context>
chip_gen: v5e
topology: v5e:2x2
jax: 0.10.0
libtpu: 0.0.40
codegen_flags: <defaults>
</compile_context>

<pallas_src>
import jax
import jax.numpy as jnp
from jax.experimental import pallas as pl
from jax.experimental.pallas import tpu as pltpu


def _fused_linear_relu_kernel(x_ref, w_ref, b_ref, o_ref):
    # Per grid step (i = 0 -> h path, i = 1 -> c path), leading axis squeezed:
    #   x_ref: (N, 2H) bf16   w_ref: (2H, H) bf16   b_ref: (1, H) f32   o_ref: (N, H) f32
    y = jnp.dot(x_ref[...], w_ref[...], preferred_element_type=jnp.float32)
    y = y + b_ref[...]                       # broadcast bias over rows (f32)
    o_ref[...] = jnp.maximum(y, 0.0).astype(o_ref.dtype)


def _fused_linear_relu(x, w, b):
    """x: (2, N, 2H) bf16, w: (2, 2H, H) bf16, b: (2, 1, H) f32 -> (2, N, H) f32."""
    two, n, k = x.shape
    _, _, m = w.shape
    out_bytes = two * n * m * 4
    cost = pl.CostEstimate(
        flops=2 * two * n * k * m,
        transcendentals=0,
        bytes_accessed=x.nbytes + w.nbytes + b.nbytes + out_bytes,
    )
    return pl.pallas_call(
        _fused_linear_relu_kernel,
        out_shape=jax.ShapeDtypeStruct((two, n, m), jnp.float32),
        grid=(two,),
        in_specs=[
            pl.BlockSpec((None, n, k), lambda i: (i, 0, 0)),
            pl.BlockSpec((None, k, m), lambda i: (i, 0, 0)),
            pl.BlockSpec((None, 1, m), lambda i: (i, 0, 0)),
        ],
        out_specs=pl.BlockSpec((None, n, m), lambda i: (i, 0, 0)),
        compiler_params=pltpu.CompilerParams(
            dimension_semantics=("parallel",)),   # h/c GEMMs on separate TCs on v7x
        cost_estimate=cost,
    )(x, w, b)


class ReduceStateParams:
    """Deterministic parameter init mirroring init_linear_wt (normal, std=1e-4)."""

    def __init__(self, hidden_dim, key):
        k1, k2, k3, k4 = jax.random.split(key, 4)
        std = 1e-4
        # PyTorch Linear weight is (out, in) = (H, 2H); we store the transpose
        # (2H, H) so the kernel does x @ W directly.  h and c weights/biases are
        # stacked along a leading axis so a single fused kernel handles both.
        w_h = jax.random.normal(k1, (2 * hidden_dim, hidden_dim), jnp.float32) * std
        b_h = jax.random.normal(k2, (1, hidden_dim), jnp.float32) * std
        w_c = jax.random.normal(k3, (2 * hidden_dim, hidden_dim), jnp.float32) * std
        b_c = jax.random.normal(k4, (1, hidden_dim), jnp.float32) * std
        self.w_f32 = jnp.stack([w_h, w_c])                    # (2, 2H, H) f32 master copy
        self.w = self.w_f32.astype(jnp.bfloat16)              # (2, 2H, H) bf16 for the MXU
        self.b = jnp.stack([b_h, b_c])                        # (2, 1, H)  f32
        self.hidden_dim = hidden_dim


def reduce_state_forward(params, hidden):
    """hidden = (h, c), each of shape (2, batch, hidden_dim)."""
    h, c = hidden
    H = params.hidden_dim
    # Exactly mirrors torch's .view(-1, 2H): a flat row-major reshape.
    h2 = h.reshape(-1, 2 * H)
    c2 = c.reshape(-1, 2 * H)
    x = jnp.stack([h2, c2]).astype(jnp.bfloat16)              # (2, N, 2H) bf16
    out = _fused_linear_relu(x, params.w, params.b)           # (2, N, H)  f32
    # unsqueeze(0) on each path
    return out[0][None, ...], out[1][None, ...]


if __name__ == "__main__":
    hidden_dim = 32
    batch = 2

    key = jax.random.PRNGKey(0)
    kp, kh, kc = jax.random.split(key, 3)

    params = ReduceStateParams(hidden_dim, kp)

    # LSTM bidirectional hidden state layout: (num_directions=2, batch, hidden_dim)
    h = jax.random.normal(kh, (2, batch, hidden_dim), jnp.float32)
    c = jax.random.normal(kc, (2, batch, hidden_dim), jnp.float32)

    out_h, out_c = reduce_state_forward(params, (h, c))
    jax.block_until_ready(out_h)
    jax.block_until_ready(out_c)

    assert out_h.shape == (1, batch, hidden_dim)
    assert out_c.shape == (1, batch, hidden_dim)

    # Reference 1: same bf16-rounded operands, f32 math (tight tolerance).
    h2b = h.reshape(-1, 2 * hidden_dim).astype(jnp.bfloat16).astype(jnp.float32)
    c2b = c.reshape(-1, 2 * hidden_dim).astype(jnp.bfloat16).astype(jnp.float32)
    w_hb = params.w[0].astype(jnp.float32)
    w_cb = params.w[1].astype(jnp.float32)
    ref_h = jnp.maximum(h2b @ w_hb + params.b[0], 0.0)[None]
    ref_c = jnp.maximum(c2b @ w_cb + params.b[1], 0.0)[None]
    assert jnp.allclose(out_h, ref_h, atol=2e-5)
    assert jnp.allclose(out_c, ref_c, atol=2e-5)

    # Reference 2: full-precision f32 semantics (loose tolerance for bf16 cast).
    ref_h32 = jnp.maximum(h.reshape(-1, 2 * hidden_dim) @ params.w_f32[0] + params.b[0], 0.0)[None]
    ref_c32 = jnp.maximum(c.reshape(-1, 2 * hidden_dim) @ params.w_f32[1] + params.b[1], 0.0)[None]
    assert jnp.allclose(out_h, ref_h32, atol=1e-3)
    assert jnp.allclose(out_c, ref_c32, atol=1e-3)

    print("KERNEL_OK")
</pallas_src>

<mosaic_0001>
module attributes {stable_mosaic.version = 11 : i64} {
  func.func @_fused_linear_relu_kernel(%arg0: i32, %arg1: memref<1x2x64xbf16, #tpu.memory_space<vmem>>, %arg2: memref<1x64x32xbf16, #tpu.memory_space<vmem>>, %arg3: memref<1x1x32xf32, #tpu.memory_space<vmem>>, %arg4: memref<1x2x32xf32, #tpu.memory_space<vmem>>) attributes {dimension_semantics = [#tpu.dimension_semantics<parallel>], iteration_bounds = array<i64: 2>, scalar_prefetch = 0 : i64, scratch_operands = 0 : i64, tpu.core_type = #tpu.core_type<tc>, window_params = [{transform_indices = @transform_0, window_bounds = array<i64: 1, 2, 64>}, {transform_indices = @transform_1, window_bounds = array<i64: 1, 64, 32>}, {transform_indices = @transform_2, window_bounds = array<i64: 1, 1, 32>}, {transform_indices = @transform_3, window_bounds = array<i64: 1, 2, 32>}]} {
    %c0 = arith.constant 0 : index
    %c0_0 = arith.constant 0 : index
    %c0_1 = arith.constant 0 : index
    %0 = vector.load %arg1[%c0, %c0_0, %c0_1] : memref<1x2x64xbf16, #tpu.memory_space<vmem>>, vector<1x2x64xbf16>
    %1 = vector.shape_cast %0 : vector<1x2x64xbf16> to vector<2x64xbf16>
    %c0_2 = arith.constant 0 : index
    %c0_3 = arith.constant 0 : index
    %c0_4 = arith.constant 0 : index
    %2 = vector.load %arg2[%c0_2, %c0_3, %c0_4] : memref<1x64x32xbf16, #tpu.memory_space<vmem>>, vector<1x64x32xbf16>
    %3 = vector.shape_cast %2 : vector<1x64x32xbf16> to vector<64x32xbf16>
    %cst = arith.constant dense<0.000000e+00> : vector<2x32xf32>
    %4 = tpu.matmul %1, %3, %cst {dimension_numbers = #tpu.dot_dimension_numbers<[1], [0], [0], [1], [0, 0, 1, 1], [], []>} : vector<2x64xbf16>, vector<64x32xbf16>, vector<2x32xf32> -> vector<2x32xf32>
    %c0_5 = arith.constant 0 : index
    %c0_6 = arith.constant 0 : index
    %c0_7 = arith.constant 0 : index
    %5 = vector.load %arg3[%c0_5, %c0_6, %c0_7] : memref<1x1x32xf32, #tpu.memory_space<vmem>>, vector<1x1x32xf32>
    %6 = vector.shape_cast %5 : vector<1x1x32xf32> to vector<1x32xf32>
    %7 = vector.broadcast %6 : vector<1x32xf32> to vector<2x32xf32>
    %8 = arith.addf %4, %7 : vector<2x32xf32>
    %cst_8 = arith.constant 0.000000e+00 : f32
    %9 = vector.broadcast %cst_8 : f32 to vector<2x32xf32>
    %10 = arith.maximumf %8, %9 : vector<2x32xf32>
    %c0_9 = arith.constant 0 : index
    %c0_10 = arith.constant 0 : index
    %c0_11 = arith.constant 0 : index
    %11 = vector.load %arg4[%c0_9, %c0_10, %c0_11] : memref<1x2x32xf32, #tpu.memory_space<vmem>>, vector<1x2x32xf32>
    %12 = vector.shape_cast %11 : vector<1x2x32xf32> to vector<2x32xf32>
    %13 = vector.shape_cast %10 : vector<2x32xf32> to vector<1x2x32xf32>
    tpu.vector_store %arg4[%c0_9, %c0_10, %c0_11], %13 {strides = array<i32>} : memref<1x2x32xf32, #tpu.memory_space<vmem>>, vector<1x2x32xf32>,
    return
  }
  func.func @transform_0(%arg0: i32) -> (i32, i32, i32) {
    %c0_i32 = arith.constant 0 : i32
    %c0_i32_0 = arith.constant 0 : i32
    %c0_i32_1 = arith.constant 0 : i32
    return %arg0, %c0_i32, %c0_i32_0 : i32, i32, i32
  }
  func.func @transform_1(%arg0: i32) -> (i32, i32, i32) {
    %c0_i32 = arith.constant 0 : i32
    %c0_i32_0 = arith.constant 0 : i32
    %c0_i32_1 = arith.constant 0 : i32
    return %arg0, %c0_i32, %c0_i32_0 : i32, i32, i32
  }
  func.func @transform_2(%arg0: i32) -> (i32, i32, i32) {
    %c0_i32 = arith.constant 0 : i32
    %c0_i32_0 = arith.constant 0 : i32
    %c0_i32_1 = arith.constant 0 : i32
    return %arg0, %c0_i32, %c0_i32_0 : i32, i32, i32
  }
  func.func @transform_3(%arg0: i32) -> (i32, i32, i32) {
    %c0_i32 = arith.constant 0 : i32
    %c0_i32_0 = arith.constant 0 : i32
    %c0_i32_1 = arith.constant 0 : i32
    return %arg0, %c0_i32, %c0_i32_0 : i32, i32, i32
  }
}

</mosaic_0001>

<llo_original>
// kernel: tpu_custom_call.1
$region0: #{tpu_custom_call.1}
  #allocation0 [shape = 'u32[]', space=smem, size = 0x4, offset = 0x4, fixed_abs, tag = 'smem constant byte address 0x4 - core index']
  #allocation1 [shape = 'u32[72,128]{1,0:T(1,128)}', space=vmem, size = 0x9000, scoped, tag = 'internal scratch']
  %s0 = inlined_call_operand.vmem [shape: bf16[2,2,64], index: 0, kind: input, shape index: {}]
  %s1 = inlined_call_operand.vmem [shape: bf16[2,64,32], index: 1, kind: input, shape index: {}]
  %s2 = inlined_call_operand.vmem [shape: f32[2,1,32], index: 2, kind: input, shape index: {}]
  %s3 = inlined_call_operand.hbm [shape: f32[2,2,32], index: 3, kind: output, shape index: {}]
  %s4 = sld [smem:[#allocation0]]
  $region45: #{tpu_custom_call.1} parent=0
    _
  %s6 = ssub.s32 1, %s4
  %s7 = scalar_select 0, %s6, %s4
  $region1: #{tpu_custom_call.1} parent=0
    #allocation2 [shape = 'u8[2048]{0}', space=vmem, size = 0x800, scoped, tag = 'output window, operand 0']
    #allocation3 [shape = 's32[2]{0}', space=sflag, size = 0x8, scoped, tag = 'scoped memory for tpu_custom_call.1']
    %8 = vsyncpa [#allocation3], 0
    %s9 = scalar_lea.sflag [#allocation3], 1
    %10 = vsyncpa %s9, 0
    loop: start=0, step=1, limit=4
    $region2: #{tpu_custom_call.1} parent=1 // loop_pre_header
      _
    $region3: #{tpu_custom_call.1} parent=1 // loop_header
      %s12 = sphi 0, %s16
      %p13 = scmp.ge.s32.totalorder %s12, 4
      %s22 = sphi 0, %s24
      %s25 = sphi 0, %s22
      %s26 = sphi 0, %s25
      %s42 = sphi 0, %s26
      %s48 = sphi 0, %s50
      %s51 = sphi 0, %s48
      %s52 = sphi 0, %s51
      %s68 = sphi 0, %s52
      %s74 = sphi 0, %s76
      %s77 = sphi 0, %s74
      %s78 = sphi 0, %s77
      %s94 = sphi 0, %s78
      %s100 = sphi 0, %s102
      %s103 = sphi 0, %s100
      %s104 = sphi 0, %s103
      %s120 = sphi 0, %s104
    $region4: #{tpu_custom_call.1} parent=1 // loop_header_branch
      %15 = sbr.rel (%p13) target = $region8
    $region5: #{tpu_custom_call.1} parent=1 // loop_body
      %s17 = ssub.s32 %s12, 1
      %s18 = ssub.s32 %s12, 2
      %s19 = sadd.s32 %s12, 1
      %s20 = ssub.s32 %s12, %s19
      %p21 = scmp.eq.s32.totalorder %s20, 0
      %s23 = sadd.s32 %s22, 1
      %s24 = scalar_select %p21, %s22, %s23
      %p27 = pneg %p21
      %p28 = scmp.eq.s32.totalorder %s12, 1
      %p29 = por %p27, %p28
      %p30 = scmp.ne.s32.totalorder %s22, %s25
      %p31 = scmp.eq.s32.totalorder %s12, 0
      %p32 = por %p30, %p31
      %p33 = scmp.ne.s32.totalorder %s22, %s25
      %p34 = scmp.eq.s32.totalorder %s17, 1
      %p35 = por %p33, %p34
      %p36 = scmp.ne.s32.totalorder %s25, %s26
      %p37 = scmp.eq.s32.totalorder %s17, 0
      %p38 = por %p36, %p37
      %p39 = scmp.ne.s32.totalorder %s25, %s26
      %p40 = scmp.eq.s32.totalorder %s18, 1
      %p41 = por %p39, %p40
      %p43 = scmp.ne.s32.totalorder %s26, %s42
      %p44 = scmp.eq.s32.totalorder %s18, 0
      %p45 = por %p43, %p44
      %s46 = ssub.s32 %s12, %s19
      %p47 = scmp.eq.s32.totalorder %s46, 0
      %s49 = sadd.s32 %s48, 1
      %s50 = scalar_select %p47, %s48, %s49
      %p53 = pneg %p47
      %p54 = scmp.eq.s32.totalorder %s12, 1
      %p55 = por %p53, %p54
      %p56 = scmp.ne.s32.totalorder %s48, %s51
      %p57 = scmp.eq.s32.totalorder %s12, 0
      %p58 = por %p56, %p57
      %p59 = scmp.ne.s32.totalorder %s48, %s51
      %p60 = scmp.eq.s32.totalorder %s17, 1
      %p61 = por %p59, %p60
      %p62 = scmp.ne.s32.totalorder %s51, %s52
      %p63 = scmp.eq.s32.totalorder %s17, 0
      %p64 = por %p62, %p63
      %p65 = scmp.ne.s32.totalorder %s51, %s52
      %p66 = scmp.eq.s32.totalorder %s18, 1
      %p67 = por %p65, %p66
      %p69 = scmp.ne.s32.totalorder %s52, %s68
      %p70 = scmp.eq.s32.totalorder %s18, 0
      %p71 = por %p69, %p70
      %s72 = ssub.s32 %s12, %s19
      %p73 = scmp.eq.s32.totalorder %s72, 0
      %s75 = sadd.s32 %s74, 1
      %s76 = scalar_select %p73, %s74, %s75
      %p79 = pneg %p73
      %p80 = scmp.eq.s32.totalorder %s12, 1
      %p81 = por %p79, %p80
      %p82 = scmp.ne.s32.totalorder %s74, %s77
      %p83 = scmp.eq.s32.totalorder %s12, 0
      %p84 = por %p82, %p83
      %p85 = scmp.ne.s32.totalorder %s74, %s77
      %p86 = scmp.eq.s32.totalorder %s17, 1
      %p87 = por %p85, %p86
      %p88 = scmp.ne.s32.totalorder %s77, %s78
      %p89 = scmp.eq.s32.totalorder %s17, 0
      %p90 = por %p88, %p89
      %p91 = scmp.ne.s32.totalorder %s77, %s78
      %p92 = scmp.eq.s32.totalorder %s18, 1
      %p93 = por %p91, %p92
      %p95 = scmp.ne.s32.totalorder %s78, %s94
      %p96 = scmp.eq.s32.totalorder %s18, 0
      %p97 = por %p95, %p96
      %s98 = ssub.s32 %s12, %s19
      %p99 = scmp.eq.s32.totalorder %s98, 0
      %s101 = sadd.s32 %s100, 1
      %s102 = scalar_select %p99, %s100, %s101
      %p105 = pneg %p99
      %p106 = scmp.eq.s32.totalorder %s12, 1
      %p107 = por %p105, %p106
      %p108 = scmp.ne.s32.totalorder %s100, %s103
      %p109 = scmp.eq.s32.totalorder %s12, 0
      %p110 = por %p108, %p109
      %p111 = scmp.ne.s32.totalorder %s100, %s103
      %p112 = scmp.eq.s32.totalorder %s17, 1
      %p113 = por %p111, %p112
      %p114 = scmp.ne.s32.totalorder %s103, %s104
      %p115 = scmp.eq.s32.totalorder %s17, 0
      %p116 = por %p114, %p115
      %p117 = scmp.ne.s32.totalorder %s103, %s104
      %p118 = scmp.eq.s32.totalorder %s18, 1
      %p119 = por %p117, %p118
      %p121 = scmp.ne.s32.totalorder %s104, %s120
      %p122 = scmp.eq.s32.totalorder %s18, 0
      %p123 = por %p121, %p122
      %p124 = scmp.le.s32.totalorder 1, %s12
      %p125 = scmp.lt.s32.totalorder %s12, 3
      %p126 = pnand %p124, %p125
      %p127 = pneg %p126
      // Predicated region
      $region9: #{tpu_custom_call.1} parent=5 // pred_check
        _
      $region10: #{tpu_custom_call.1} parent=5 // pred_check_branch
        %129 = sbr.rel (%p126) target = $region12
      $region11: #{tpu_custom_call.1} parent=5 // pred_region
        %s130 = ssub.s32 %s12, 1
      $region12: #{tpu_custom_call.1} parent=5 // pred_fallthru
        _
      %p131 = scmp.lt.s32.totalorder %s12, 2
      // Predicated region
      $region13: #{tpu_custom_call.1} parent=5 // pred_check
        %p132 = pneg %p131
      $region14: #{tpu_custom_call.1} parent=5 // pred_check_branch
        %134 = sbr.rel (%p132) target = $region16
      $region15: #{tpu_custom_call.1} parent=5 // pred_region
        // Predicated region
        $region17: #{tpu_custom_call.1} parent=15 // pred_check
          %p135 = pneg %p32
        $region18: #{tpu_custom_call.1} parent=15 // pred_check_branch
          %137 = sbr.rel (%p135) target = $region20
        $region19: #{tpu_custom_call.1} parent=15 // pred_region
          %p138 = scmp.lt.s32.totalorder %s12, 1
          %s139 = scalar_select %p138, %s12, 1
          %s140 = scalar_lea.vmem %s0, %s139
        $region20: #{tpu_custom_call.1} parent=15 // pred_fallthru
          _
        // Predicated region
        $region21: #{tpu_custom_call.1} parent=15 // pred_check
          %p141 = pneg %p58
        $region22: #{tpu_custom_call.1} parent=15 // pred_check_branch
          %143 = sbr.rel (%p141) target = $region24
        $region23: #{tpu_custom_call.1} parent=15 // pred_region
          %p144 = scmp.lt.s32.totalorder %s12, 1
          %s145 = scalar_select %p144, %s12, 1
          %s146 = smul.addr %s145, 8
          %s147 = smul.addr %s146, 4
          %s148 = scalar_lea.vmem %s1, %s147
        $region24: #{tpu_custom_call.1} parent=15 // pred_fallthru
          _
        // Predicated region
        $region25: #{tpu_custom_call.1} parent=15 // pred_check
          %p149 = pneg %p84
        $region26: #{tpu_custom_call.1} parent=15 // pred_check_branch
          %151 = sbr.rel (%p149) target = $region28
        $region27: #{tpu_custom_call.1} parent=15 // pred_region
          %p152 = scmp.lt.s32.totalorder %s12, 1
          %s153 = scalar_select %p152, %s12, 1
          %s154 = scalar_lea.vmem %s2, %s153
        $region28: #{tpu_custom_call.1} parent=15 // pred_fallthru
          _
      $region16: #{tpu_custom_call.1} parent=5 // pred_fallthru
        _
      %p155 = scmp.le.s32.totalorder 1, %s12
      %p156 = scmp.lt.s32.totalorder %s12, 3
      %p157 = pnand %p155, %p156
      %p158 = pneg %p157
      // Predicated region
      $region29: #{tpu_custom_call.1} parent=5 // pred_check
        _
      $region30: #{tpu_custom_call.1} parent=5 // pred_check_branch
        %160 = sbr.rel (%p157) target = $region32
      $region31: #{tpu_custom_call.1} parent=5 // pred_region
        %s161 = ssub.s32 %s12, 1
        %p162 = scmp.lt.s32.totalorder %s17, 1
        %s163 = scalar_select %p162, %s17, 1
        %s164 = scalar_lea.vmem %s0, %s163
        %p165 = pneg %p38
        %p166 = pneg %p35
        %p167 = scmp.lt.s32.totalorder %s17, 1
        %s168 = scalar_select %p167, %s17, 1
        %s169 = smul.addr %s168, 8
        %s170 = smul.addr %s169, 4
        %s171 = scalar_lea.vmem %s1, %s170
        %p172 = pneg %p64
        %p173 = pneg %p61
        %p174 = scmp.lt.s32.totalorder %s17, 1
        %s175 = scalar_select %p174, %s17, 1
        %s176 = scalar_lea.vmem %s2, %s175
        %p177 = pneg %p90
        %p178 = pneg %p87
        %p179 = pneg %p116
        %p180 = pneg %p113
        %s181 = sand.u32 %s103, 1
        %s182 = scalar_lea.sflag [#allocation3], %s181
        %s183 = sand.u32 %s103, 1
        %s184 = smul.addr %s183, 2
        %s185 = scalar_lea.vmem [#allocation2], %s184
        %p186 = scmp.lt.s32.totalorder %s17, 1
        %s187 = scalar_select %p186, %s17, 1
        %s188 = scalar_lea.vmem %s0, %s187
        %p189 = scmp.lt.s32.totalorder %s17, 1
        %s190 = scalar_select %p189, %s17, 1
        %s191 = smul.addr %s190, 8
        %s192 = smul.addr %s191, 4
        %s193 = scalar_lea.vmem %s1, %s192
        %p194 = scmp.lt.s32.totalorder %s17, 1
        %s195 = scalar_select %p194, %s17, 1
        %s196 = scalar_lea.vmem %s2, %s195
        %v198 = vld [vmem:[%s188] sm:$0x1]
        %v199 = vld [vmem:[%s193] sm:$0xf]
        %v200 = vld [vmem:[%s193 + $0x4] sm:$0xf]
        %v201 = vld [vmem:[%s193 + $0x8] sm:$0xf]
        %v202 = vld [vmem:[%s193 + $0xc] sm:$0xf]
        %v203 = vld [vmem:[%s193 + $0x10] sm:$0xf]
        %v204 = vld [vmem:[%s193 + $0x14] sm:$0xf]
        %v205 = vld [vmem:[%s193 + $0x18] sm:$0xf]
        %v206 = vld [vmem:[%s193 + $0x1c] sm:$0xf]
        %v207 = vld [vmem:[%s196] sm:$0x1]
        %v209 = vperm.slane %v207, 0
        %v219 = vunpack.c.l.b16 %v199
        %v220 = vunpack.c.l.b16 %v200
        %v221 = vunpack.c.l.b16 %v201
        %v222 = vunpack.c.l.b16 %v202
        %v223 = vunpack.c.l.b16 %v203
        %v224 = vunpack.c.l.b16 %v204
        %v225 = vunpack.c.l.b16 %v205
        %v226 = vunpack.c.l.b16 %v206
        %v227 = vpack.c.b16 %v220, %v219
        %v228 = vpack.c.b16 %v222, %v221
        %v229 = vpack.c.b16 %v224, %v223
        %v230 = vpack.c.b16 %v226, %v225
        %vm235 = vcmask 523264
        %v237 = vsel %vm235, %v198, 0
        %239 = vmatpush.bf16.msra.mxu0 0
        %240 = vmatpush.bf16.msra.mxu0 0
        %241 = vmatpush.bf16.msra.mxu0 0
        %242 = vmatpush.bf16.msra.mxu0 0
        %243 = vmatpush.bf16.msra.mxu0 %v230
        %244 = vmatpush.bf16.msra.mxu0 %v229
        %245 = vmatpush.bf16.msra.mxu0 %v228
        %246 = vmatpush.bf16.msra.mxu0 %v227
        %247 = vmatmul.bf16.gmra.mxu0 %v237
        %v248 = vpop.f32.mrf.mxu0
        %v249 = vadd.f32 %v209, %v248
        %v250 = vpop.f32.mrf.mxu0
        %251 = vdwg.mxu0
        %v252 = vmax.f32 %v249, 0.0
        %vm253 = vcmask 254976
        %254 = vst.msk [vmem:[%s185] sm:$0x3] %vm253, %v252
        %s255 = sand.u32 %s103, 1
        %s256 = scalar_lea.sflag [#allocation3], %s255
        %s257 = sand.u32 %s103, 1
        %s258 = smul.addr %s257, 2
        %s259 = scalar_lea.vmem [#allocation2], %s258
        // Predicated region
        $region33: #{tpu_custom_call.1} parent=31 // pred_check
          %p260 = pneg %p113
        $region34: #{tpu_custom_call.1} parent=31 // pred_check_branch
          %262 = sbr.rel (%p260) target = $region36
        $region35: #{tpu_custom_call.1} parent=31 // pred_region
          %264 = vsyncadd %s256, 0
          %s265 = smul.addr %s17, 2
          %s266 = scalar_lea.hbm %s3, %s265
          %s268 = sshll.u32 %s259, 4
          %s269 = int_to_ptr.vmem [resolvable:$true] %s268
          %s270 = sshll.u32 %s266, 4
          %s271 = int_to_ptr.hbm [resolvable:$true] %s270
          %273 = dma.vmem_to_hbm [thread:$0]  %s269, 32, %s271, %s256
        $region36: #{tpu_custom_call.1} parent=31 // pred_fallthru
          _
      $region32: #{tpu_custom_call.1} parent=5 // pred_fallthru
        _
      %p274 = scmp.le.s32.totalorder 2, %s12
      // Predicated region
      $region37: #{tpu_custom_call.1} parent=5 // pred_check
        %p275 = pneg %p274
      $region38: #{tpu_custom_call.1} parent=5 // pred_check_branch
        %277 = sbr.rel (%p275) target = $region40
      $region39: #{tpu_custom_call.1} parent=5 // pred_region
        %s278 = ssub.s32 %s12, 2
        // Predicated region
        $region41: #{tpu_custom_call.1} parent=39 // pred_check
          %p279 = pneg %p119
        $region42: #{tpu_custom_call.1} parent=39 // pred_check_branch
          %281 = sbr.rel (%p279) target = $region44
        $region43: #{tpu_custom_call.1} parent=39 // pred_region
          %s282 = sand.u32 %s104, 1
          %s283 = scalar_lea.sflag [#allocation3], %s282
          %s284 = sand.u32 %s104, 1
          %s285 = smul.addr %s284, 2
          %s286 = scalar_lea.vmem [#allocation2], %s285
          %288 = dma.done %s283, 32
        $region44: #{tpu_custom_call.1} parent=39 // pred_fallthru
          _
      $region40: #{tpu_custom_call.1} parent=5 // pred_fallthru
        _
    $region6: #{tpu_custom_call.1} parent=1 // loop_footer
      %s16 = sadd.s32 1, %s12
    $region7: #{tpu_custom_call.1} parent=1 // loop_footer_branch
      %11 = sbr.rel target = $region3
    $region8: #{tpu_custom_call.1} parent=1 // loop_exit
      _
    %289 = vsyncpa [#allocation3], 1
    %s290 = scalar_lea.sflag [#allocation3], 1
    %291 = vsyncpa %s290, 1

</llo_original>
